<compile_context>
chip_gen: v7x
topology: tpu7x:2x2x1
jax: 0.10.0
libtpu: 0.0.40
codegen_flags: <defaults>
</compile_context>

<pallas_src>
import jax
import jax.numpy as jnp
from jax.experimental import pallas as pl
from jax.experimental.pallas import tpu as pltpu

_LANES = 128
_SUBLANES = 8
_EPS = 1e-8


def _vmem_capacity_bytes():
    """Physical per-core VMEM; conservative fallback = v7x's 64 MiB."""
    try:
        info = pltpu.get_tpu_info()
        cap = getattr(info, "vmem_capacity_bytes", None)
        if cap:
            return int(cap)
    except Exception:
        pass
    return 64 * 1024 * 1024


def _round_up(v, m):
    return -(-v // m) * m


# ---------------------------------------------------------------------------
# Path A: whole per-batch slab resident in VMEM (grid = (B,), 2 HBM passes).
# ---------------------------------------------------------------------------
def _make_single_slab_kernel(n_elems):
    inv_n = 1.0 / float(n_elems)

    def kernel(gamma_ref, beta_ref, alpha_ref, x_ref, o_ref):
        x = x_ref[...].astype(jnp.float32)                  # (1, C, L)
        mean = jnp.sum(x) * inv_n                           # exact two-pass
        xc = x - mean
        var = jnp.sum(xc * xc) * inv_n
        rstd = jax.lax.rsqrt(var + _EPS)
        scale = gamma_ref[...].astype(jnp.float32) * rstd   # (1, C, 1)
        y = xc * scale + beta_ref[...].astype(jnp.float32)
        a = alpha_ref[0, 0]
        o_ref[...] = jnp.where(y > 0, y, a * y).astype(o_ref.dtype)

    return kernel


# ---------------------------------------------------------------------------
# Path B: two-phase streaming (stats pass + normalize pass), serpentine order.
# ---------------------------------------------------------------------------
def _make_two_phase_kernel(C, L, TL, NL):
    n_elems = C * L                       # true element count (ignores padding)
    inv_n = 1.0 / float(n_elems)
    inv_n0 = 1.0 / float(C * TL)          # first tile is always full (NL >= 2)
    rem = L - (NL - 1) * TL               # valid length of the last tile
    ragged = rem != TL

    def kernel(gamma_ref, beta_ref, alpha_ref, x_ref, o_ref,
               sum_ref, sumsq_ref, pivot_ref, scale_ref, shift_ref):
        phase = pl.program_id(1)
        lt = pl.program_id(2)

        @pl.when(jnp.logical_and(phase == 0, lt == 0))
        def _init():
            x0 = x_ref[...].astype(jnp.float32)
            # Shifted-variance pivot K ~= mean:  var = E[(x-K)^2] - E[x-K]^2
            # avoids the catastrophic cancellation of plain E[x^2] - E[x]^2.
            pivot_ref[...] = jnp.sum(x0) * inv_n0 + jnp.zeros_like(pivot_ref)
            sum_ref[...] = jnp.zeros_like(sum_ref)
            sumsq_ref[...] = jnp.zeros_like(sumsq_ref)

        @pl.when(phase == 0)
        def _accumulate():
            x = x_ref[...].astype(jnp.float32)              # (1, C, TL)
            xs = x - pivot_ref[...]
            if ragged:
                # Last tile is partial: the out-of-bounds region of the block
                # holds undefined data, so mask it out of the statistics.
                bound = jnp.where(lt == NL - 1, rem, TL)
                pos = jax.lax.broadcasted_iota(jnp.int32, xs.shape, 2)
                xs = jnp.where(pos < bound, xs, 0.0)
            sum_ref[...] += jnp.sum(xs)
            sumsq_ref[...] += jnp.sum(xs * xs)

        @pl.when(jnp.logical_and(phase == 1, lt == 0))
        def _finalize_stats():
            # Hoisted once per batch: mean/var/rsqrt and the per-channel
            # scale/shift reused by every phase-1 tile.
            s = sum_ref[...] * inv_n                        # (1, 1)
            mean = pivot_ref[...] + s
            var = jnp.maximum(sumsq_ref[...] * inv_n - s * s, 0.0)
            rstd = jax.lax.rsqrt(var + _EPS)
            sc = gamma_ref[...].astype(jnp.float32) * rstd  # (1, C, 1)
            scale_ref[...] = sc
            shift_ref[...] = beta_ref[...].astype(jnp.float32) - mean * sc

        @pl.when(phase == 1)
        def _normalize():
            x = x_ref[...].astype(jnp.float32)
            y = x * scale_ref[...] + shift_ref[...]         # fused affine
            a = alpha_ref[0, 0]
            o_ref[...] = jnp.where(y > 0, y, a * y).astype(o_ref.dtype)

    return kernel


# ---------------------------------------------------------------------------
# Wrapper
# ---------------------------------------------------------------------------
def norm_act(x, gamma, beta, alpha, *, vmem_budget_bytes=None):
    """GlobLN + PReLU.  x: [B, C, *spatial]; gamma/beta: [C]; alpha: scalar."""
    orig_shape = x.shape
    B, C = int(orig_shape[0]), int(orig_shape[1])
    L = 1
    for s in orig_shape[2:]:
        L *= int(s)

    x3 = x.reshape(B, C, L)                      # free metadata reshape
    itemsize = jnp.dtype(x.dtype).itemsize

    cap = _vmem_capacity_bytes()
    budget = int(vmem_budget_bytes) if vmem_budget_bytes is not None else (cap * 3) // 4

    # Live-VMEM model per slab element: x double-buffered + out double-buffered
    # (4 * itemsize) plus ~4 slab-sized f32 temporaries inside the fused math.
    c_pad = _round_up(C, _SUBLANES)
    nch = -(-L // _LANES)                        # ceil(L / 128)
    l_pad = nch * _LANES
    per_elem = 4 * itemsize + 4 * 4
    slab_live = c_pad * l_pad * per_elem
    params_bytes = 4 * c_pad * _LANES * 4        # gamma/beta/scale/shift residents

    gamma3 = jnp.asarray(gamma, jnp.float32).reshape(1, C, 1)
    beta3 = jnp.asarray(beta, jnp.float32).reshape(1, C, 1)
    alpha2 = jnp.asarray(alpha, jnp.float32).reshape(1, 1)
    out_shape = jax.ShapeDtypeStruct((B, C, L), x.dtype)

    single_slab = (nch == 1) or (slab_live + params_bytes <= budget)

    if single_slab:
        vmem_limit = int(min(cap, max(budget, slab_live + params_bytes + (4 << 20),
                                      32 << 20)))
        out3 = pl.pallas_call(
            _make_single_slab_kernel(C * L),
            out_shape=out_shape,
            grid_spec=pltpu.PrefetchScalarGridSpec(
                num_scalar_prefetch=0,
                grid=(B,),
                in_specs=[
                    pl.BlockSpec(memory_space=pltpu.MemorySpace.VMEM),   # gamma
                    pl.BlockSpec(memory_space=pltpu.MemorySpace.VMEM),   # beta
                    pl.BlockSpec(memory_space=pltpu.MemorySpace.SMEM),   # alpha
                    pl.BlockSpec((1, C, L), lambda b: (b, 0, 0)),        # x slab
                ],
                out_specs=pl.BlockSpec((1, C, L), lambda b: (b, 0, 0)),
            ),
            compiler_params=pltpu.CompilerParams(
                dimension_semantics=("parallel",),
                vmem_limit_bytes=vmem_limit),
            cost_estimate=pl.CostEstimate(
                flops=9 * B * C * L, transcendentals=B,
                bytes_accessed=2 * B * C * L * itemsize),
        )(gamma3, beta3, alpha2, x3)
        return out3.reshape(orig_shape)

    # ----- multi-tile two-phase path -----
    bytes_per_chunk = c_pad * _LANES * per_elem
    tl_chunks = int(max(1, min(budget // bytes_per_chunk, nch - 1)))
    TL = tl_chunks * _LANES                      # lane-dense, multiple of 128
    NL = -(-L // TL)                             # >= 2 by construction
    live = tl_chunks * bytes_per_chunk + params_bytes
    vmem_limit = int(min(cap, max(budget, live + (4 << 20), 32 << 20)))

    kernel = _make_two_phase_kernel(C, L, TL, NL)

    # x: forward in phase 0, reverse (serpentine) in phase 1 so the tile that
    # is already resident at the end of phase 0 is reused as the first
    # phase-1 tile (one fewer re-fetch, no DMA bubble at the transition).
    x_index = lambda b, p, l: (b, 0, l + p * (NL - 1 - 2 * l))
    # Output pinned to block NL-1 during all of phase 0: the kernel never
    # writes it then, and Pallas only copies an output block back to HBM when
    # its block index CHANGES, which first happens only after the first
    # phase-1 step has completely overwritten the buffer.  NOTE: relies on
    # current write-back-on-index-change semantics; keep this output out of
    # any RevisitMode that forces per-step write-back.
    o_index = lambda b, p, l: (b, 0, (NL - 1) - p * l)

    out3 = pl.pallas_call(
        kernel,
        out_shape=out_shape,
        grid_spec=pltpu.PrefetchScalarGridSpec(
            num_scalar_prefetch=0,
            grid=(B, 2, NL),                      # (batch, phase, L tile)
            in_specs=[
                pl.BlockSpec(memory_space=pltpu.MemorySpace.VMEM),       # gamma
                pl.BlockSpec(memory_space=pltpu.MemorySpace.VMEM),       # beta
                pl.BlockSpec(memory_space=pltpu.MemorySpace.SMEM),       # alpha
                pl.BlockSpec((1, C, TL), x_index),                       # x tile
            ],
            out_specs=pl.BlockSpec((1, C, TL), o_index),
            scratch_shapes=[
                pltpu.VMEM((1, 1), jnp.float32),     # running sum(x - pivot)
                pltpu.VMEM((1, 1), jnp.float32),     # running sum((x - pivot)^2)
                pltpu.VMEM((1, 1), jnp.float32),     # pivot (first-tile mean)
                pltpu.VMEM((1, C, 1), jnp.float32),  # hoisted per-channel scale
                pltpu.VMEM((1, C, 1), jnp.float32),  # hoisted per-channel shift
            ],
        ),
        compiler_params=pltpu.CompilerParams(
            dimension_semantics=("parallel", "arbitrary", "arbitrary"),
            vmem_limit_bytes=vmem_limit),
        cost_estimate=pl.CostEstimate(
            flops=9 * B * C * L, transcendentals=2 * B,
            bytes_accessed=3 * B * C * L * itemsize),
    )(gamma3, beta3, alpha2, x3)
    return out3.reshape(orig_shape)


# ---------------------------------------------------------------------------
# Pure-JAX reference (mirrors the PyTorch forward) + tests
# ---------------------------------------------------------------------------
def _reference(x, gamma, beta, alpha):
    dims = tuple(range(1, x.ndim))
    mean = jnp.mean(x, axis=dims, keepdims=True)
    var = jnp.mean((x - mean) ** 2, axis=dims, keepdims=True)
    normed = (x - mean) / jnp.sqrt(var + 1e-8)
    pshape = (1, -1) + (1,) * (x.ndim - 2)
    y = gamma.reshape(pshape) * normed + beta.reshape(pshape)
    return jnp.where(y > 0, y, alpha * y)


if __name__ == "__main__":
    key = jax.random.PRNGKey(0)
    k1, k2, k3 = jax.random.split(key, 3)
    alpha = jnp.float32(0.25)                     # nn.PReLU() default slope

    # Test 1: NCHW shape implied by the module -> single-slab path.
    B, C, H, W = 2, 4, 16, 16
    x1 = jax.random.normal(k1, (B, C, H, W), dtype=jnp.float32)
    gamma1 = jnp.ones((C,), jnp.float32)          # _LayerNorm default init
    beta1 = jnp.zeros((C,), jnp.float32)
    out1 = jax.block_until_ready(norm_act(x1, gamma1, beta1, alpha))
    ref1 = _reference(x1, gamma1, beta1, alpha)
    assert out1.shape == x1.shape
    assert jnp.allclose(out1, ref1, atol=3e-5, rtol=1e-5), "mismatch (NCHW case)"

    # Test 2: ragged [B, C, T] (T % 128 != 0) -> still single-slab, no pad/slice.
    T = 1200
    x2 = jax.random.normal(k2, (B, C, T), dtype=jnp.float32)
    gamma2 = 0.5 + 0.1 * jnp.arange(C, dtype=jnp.float32)
    beta2 = 0.01 * jnp.arange(C, dtype=jnp.float32)
    out2 = jax.block_until_ready(norm_act(x2, gamma2, beta2, alpha))
    ref2 = _reference(x2, gamma2, beta2, alpha)
    assert out2.shape == x2.shape
    assert jnp.allclose(out2, ref2, atol=3e-5, rtol=1e-5), "mismatch (ragged case)"

    # Test 3: tiny VMEM budget forces the multi-tile two-phase path with a
    # partial (masked) last tile; non-zero mean stresses the shifted variance.
    C3 = 8
    x3 = jax.random.normal(k3, (2, C3, T), dtype=jnp.float32) * 2.0 + 3.0
    gamma3 = 0.5 + 0.1 * jnp.arange(C3, dtype=jnp.float32)
    beta3 = 0.01 * jnp.arange(C3, dtype=jnp.float32)
    out3 = jax.block_until_ready(
        norm_act(x3, gamma3, beta3, alpha, vmem_budget_bytes=64 * 1024))
    ref3 = _reference(x3, gamma3, beta3, alpha)
    assert out3.shape == x3.shape
    assert jnp.allclose(out3, ref3, atol=3e-5, rtol=1e-5), "mismatch (tiled case)"

    print("KERNEL_OK")
</pallas_src>

<mosaic_0001>
module attributes {stable_mosaic.version = 11 : i64} {
  func.func @kernel(%arg0: i32, %arg1: memref<1x4x1xf32, #tpu.memory_space<vmem>>, %arg2: memref<1x4x1xf32, #tpu.memory_space<vmem>>, %arg3: memref<1x1xf32, #tpu.memory_space<smem>>, %arg4: memref<1x4x256xf32, #tpu.memory_space<vmem>>, %arg5: memref<1x4x256xf32, #tpu.memory_space<vmem>>) attributes {dimension_semantics = [#tpu.dimension_semantics<parallel>], iteration_bounds = array<i64: 2>, scalar_prefetch = 0 : i64, scratch_operands = 0 : i64, tpu.core_type = #tpu.core_type<tc>, window_params = [{pipeline_mode = #tpu.pipeline_mode<synchronous>, transform_indices = @transform_0, window_bounds = array<i64: 1, 4, 1>}, {pipeline_mode = #tpu.pipeline_mode<synchronous>, transform_indices = @transform_1, window_bounds = array<i64: 1, 4, 1>}, {transform_indices = @transform_2, window_bounds = array<i64: 1, 1>}, {transform_indices = @transform_3, window_bounds = array<i64: 1, 4, 256>}, {transform_indices = @transform_4, window_bounds = array<i64: 1, 4, 256>}]} {
    %c0 = arith.constant 0 : index
    %c0_0 = arith.constant 0 : index
    %c0_1 = arith.constant 0 : index
    %0 = vector.load %arg4[%c0, %c0_0, %c0_1] : memref<1x4x256xf32, #tpu.memory_space<vmem>>, vector<1x4x256xf32>
    %1 = vector.shape_cast %0 : vector<1x4x256xf32> to vector<1x1x4x256xf32>
    %cst = arith.constant dense<0.000000e+00> : vector<1xf32>
    %2 = vector.multi_reduction <add>, %1, %cst [1, 2, 3] : vector<1x1x4x256xf32> to vector<1xf32>
    %3 = vector.shape_cast %2 : vector<1xf32> to vector<1x1x1x1xf32>
    %4 = vector.extract %3[0, 0, 0, 0] : f32 from vector<1x1x1x1xf32>
    %cst_2 = arith.constant 9.765625E-4 : f32
    %5 = arith.mulf %4, %cst_2 : f32
    %6 = vector.broadcast %5 : f32 to vector<1x4x256xf32>
    %7 = arith.subf %0, %6 : vector<1x4x256xf32>
    %8 = arith.mulf %7, %7 : vector<1x4x256xf32>
    %9 = vector.shape_cast %8 : vector<1x4x256xf32> to vector<1x1x4x256xf32>
    %cst_3 = arith.constant dense<0.000000e+00> : vector<1xf32>
    %10 = vector.multi_reduction <add>, %9, %cst_3 [1, 2, 3] : vector<1x1x4x256xf32> to vector<1xf32>
    %11 = vector.shape_cast %10 : vector<1xf32> to vector<1x1x1x1xf32>
    %12 = vector.extract %11[0, 0, 0, 0] : f32 from vector<1x1x1x1xf32>
    %cst_4 = arith.constant 9.765625E-4 : f32
    %13 = arith.mulf %12, %cst_4 : f32
    %cst_5 = arith.constant 9.99999993E-9 : f32
    %14 = arith.addf %13, %cst_5 : f32
    %15 = math.rsqrt %14 : f32
    %c0_6 = arith.constant 0 : index
    %c0_7 = arith.constant 0 : index
    %c0_8 = arith.constant 0 : index
    %16 = vector.load %arg1[%c0_6, %c0_7, %c0_8] : memref<1x4x1xf32, #tpu.memory_space<vmem>>, vector<1x4x1xf32>
    %17 = vector.broadcast %15 : f32 to vector<1x4x1xf32>
    %18 = arith.mulf %16, %17 : vector<1x4x1xf32>
    %19 = vector.broadcast %18 : vector<1x4x1xf32> to vector<1x4x256xf32>
    %20 = arith.mulf %7, %19 : vector<1x4x256xf32>
    %c0_9 = arith.constant 0 : index
    %c0_10 = arith.constant 0 : index
    %c0_11 = arith.constant 0 : index
    %21 = vector.load %arg2[%c0_9, %c0_10, %c0_11] : memref<1x4x1xf32, #tpu.memory_space<vmem>>, vector<1x4x1xf32>
    %22 = vector.broadcast %21 : vector<1x4x1xf32> to vector<1x4x256xf32>
    %23 = arith.addf %20, %22 : vector<1x4x256xf32>
    %c0_12 = arith.constant 0 : index
    %c0_13 = arith.constant 0 : index
    %24 = memref.load %arg3[%c0_12, %c0_13] : memref<1x1xf32, #tpu.memory_space<smem>>
    %cst_14 = arith.constant 0.000000e+00 : f32
    %25 = vector.broadcast %cst_14 : f32 to vector<1x4x256xf32>
    %26 = arith.cmpf ogt, %23, %25 : vector<1x4x256xf32>
    %27 = vector.broadcast %24 : f32 to vector<1x4x256xf32>
    %28 = arith.mulf %27, %23 : vector<1x4x256xf32>
    %29 = arith.select %26, %23, %28 : vector<1x4x256xi1>, vector<1x4x256xf32>
    %c0_15 = arith.constant 0 : index
    %c0_16 = arith.constant 0 : index
    %c0_17 = arith.constant 0 : index
    %30 = vector.load %arg5[%c0_15, %c0_16, %c0_17] : memref<1x4x256xf32, #tpu.memory_space<vmem>>, vector<1x4x256xf32>
    tpu.vector_store %arg5[%c0_15, %c0_16, %c0_17], %29 {strides = array<i32>} : memref<1x4x256xf32, #tpu.memory_space<vmem>>, vector<1x4x256xf32>,
    return
  }
  func.func @transform_0(%arg0: i32) -> (i32, i32, i32) {
    %c0_i32 = arith.constant 0 : i32
    %c0_i32_0 = arith.constant 0 : i32
    %c0_i32_1 = arith.constant 0 : i32
    %c0_i32_2 = arith.constant 0 : i32
    return %c0_i32, %c0_i32_0, %c0_i32_1 : i32, i32, i32
  }
  func.func @transform_1(%arg0: i32) -> (i32, i32, i32) {
    %c0_i32 = arith.constant 0 : i32
    %c0_i32_0 = arith.constant 0 : i32
    %c0_i32_1 = arith.constant 0 : i32
    %c0_i32_2 = arith.constant 0 : i32
    return %c0_i32, %c0_i32_0, %c0_i32_1 : i32, i32, i32
  }
  func.func @transform_2(%arg0: i32) -> (i32, i32) {
    %c0_i32 = arith.constant 0 : i32
    %c0_i32_0 = arith.constant 0 : i32
    %c0_i32_1 = arith.constant 0 : i32
    return %c0_i32, %c0_i32_0 : i32, i32
  }
  func.func @transform_3(%arg0: i32) -> (i32, i32, i32) {
    %c0_i32 = arith.constant 0 : i32
    %c0_i32_0 = arith.constant 0 : i32
    %c0_i32_1 = arith.constant 0 : i32
    return %arg0, %c0_i32, %c0_i32_0 : i32, i32, i32
  }
  func.func @transform_4(%arg0: i32) -> (i32, i32, i32) {
    %c0_i32 = arith.constant 0 : i32
    %c0_i32_0 = arith.constant 0 : i32
    %c0_i32_1 = arith.constant 0 : i32
    return %arg0, %c0_i32, %c0_i32_0 : i32, i32, i32
  }
}

</mosaic_0001>

<llo_original>
// kernel: tpu_custom_call.1
$region0: #{tpu_custom_call.1}
  #allocation0 [shape = 'u32[]', space=smem, size = 0x4, offset = 0x4, fixed_abs, tag = 'smem constant byte address 0x4 - core index']
  #allocation1 [shape = 'u32[144,128]{1,0:T(1,128)}', space=vmem, size = 0x12000, scoped, tag = 'internal scratch']
  #allocation2 [shape = 'f32[1,1]{1,0:T(1,128)S(6)}', space=smem, size = 0x200, scoped, tag = 'scoped memory for tpu_custom_call.1']
  %s0 = inlined_call_operand.vmem [shape: f32[1,4,1], index: 0, kind: input, shape index: {}]
  %s1 = inlined_call_operand.vmem [shape: f32[1,4,1], index: 1, kind: input, shape index: {}]
  %s2 = inlined_call_operand.<no memory space> [shape: f32[1,1], index: 2, kind: input, shape index: {}]
  %s3 = inlined_call_operand.vmem [shape: f32[2,4,256], index: 3, kind: input, shape index: {}]
  %s4 = inlined_call_operand.hbm [shape: f32[2,4,256], index: 4, kind: output, shape index: {}]
  %s5 = sld [smem:[#allocation0]]
  $region49: #{tpu_custom_call.1} parent=0
    _
  %s7 = ssub.s32 1, %s5
  %s8 = scalar_select 0, %s7, %s5
  %9 = sst [smem:[#allocation2]] %s2
  $region1: #{tpu_custom_call.1} parent=0
    #allocation3 [shape = 'u8[8192]{0}', space=vmem, size = 0x2000, scoped, tag = 'output window, operand 0']
    #allocation4 [shape = 's32[2]{0}', space=sflag, size = 0x8, scoped, tag = 'scoped memory for tpu_custom_call.1']
    %10 = vsyncpa [#allocation4], 0
    %s11 = scalar_lea.sflag [#allocation4], 1
    %12 = vsyncpa %s11, 0
    loop: start=0, step=1, limit=4
    $region2: #{tpu_custom_call.1} parent=1 // loop_pre_header
      _
    $region3: #{tpu_custom_call.1} parent=1 // loop_header
      %s14 = sphi 0, %s18
      %p15 = scmp.ge.s32.totalorder %s14, 4
      %s22 = sphi 0, %s22
      %s24 = sphi 0, %s22
      %s25 = sphi 0, %s24
      %s39 = sphi 0, %s25
      %s43 = sphi 0, %s43
      %s45 = sphi 0, %s43
      %s46 = sphi 0, %s45
      %s60 = sphi 0, %s46
      %s64 = sphi 0, %s64
      %s66 = sphi 0, %s64
      %s67 = sphi 0, %s66
      %s81 = sphi 0, %s67
      %s87 = sphi 0, %s89
      %s90 = sphi 0, %s87
      %s91 = sphi 0, %s90
      %s107 = sphi 0, %s91
      %s113 = sphi 0, %s115
      %s116 = sphi 0, %s113
      %s117 = sphi 0, %s116
      %s133 = sphi 0, %s117
    $region4: #{tpu_custom_call.1} parent=1 // loop_header_branch
      %17 = sbr.rel (%p15) target = $region8
    $region5: #{tpu_custom_call.1} parent=1 // loop_body
      %s19 = ssub.s32 %s14, 1
      %s20 = ssub.s32 %s14, 2
      %s21 = sadd.s32 %s14, 1
      %s23 = sadd.s32 %s22, 1
      %p26 = scmp.eq.s32.totalorder %s14, 1
      %p27 = scmp.ne.s32.totalorder %s22, %s24
      %p28 = scmp.eq.s32.totalorder %s14, 0
      %p29 = por %p27, %p28
      %p30 = scmp.ne.s32.totalorder %s22, %s24
      %p31 = scmp.eq.s32.totalorder %s19, 1
      %p32 = por %p30, %p31
      %p33 = scmp.ne.s32.totalorder %s24, %s25
      %p34 = scmp.eq.s32.totalorder %s19, 0
      %p35 = por %p33, %p34
      %p36 = scmp.ne.s32.totalorder %s24, %s25
      %p37 = scmp.eq.s32.totalorder %s20, 1
      %p38 = por %p36, %p37
      %p40 = scmp.ne.s32.totalorder %s25, %s39
      %p41 = scmp.eq.s32.totalorder %s20, 0
      %p42 = por %p40, %p41
      %s44 = sadd.s32 %s43, 1
      %p47 = scmp.eq.s32.totalorder %s14, 1
      %p48 = scmp.ne.s32.totalorder %s43, %s45
      %p49 = scmp.eq.s32.totalorder %s14, 0
      %p50 = por %p48, %p49
      %p51 = scmp.ne.s32.totalorder %s43, %s45
      %p52 = scmp.eq.s32.totalorder %s19, 1
      %p53 = por %p51, %p52
      %p54 = scmp.ne.s32.totalorder %s45, %s46
      %p55 = scmp.eq.s32.totalorder %s19, 0
      %p56 = por %p54, %p55
      %p57 = scmp.ne.s32.totalorder %s45, %s46
      %p58 = scmp.eq.s32.totalorder %s20, 1
      %p59 = por %p57, %p58
      %p61 = scmp.ne.s32.totalorder %s46, %s60
      %p62 = scmp.eq.s32.totalorder %s20, 0
      %p63 = por %p61, %p62
      %s65 = sadd.s32 %s64, 1
      %p68 = scmp.eq.s32.totalorder %s14, 1
      %p69 = scmp.ne.s32.totalorder %s64, %s66
      %p70 = scmp.eq.s32.totalorder %s14, 0
      %p71 = por %p69, %p70
      %p72 = scmp.ne.s32.totalorder %s64, %s66
      %p73 = scmp.eq.s32.totalorder %s19, 1
      %p74 = por %p72, %p73
      %p75 = scmp.ne.s32.totalorder %s66, %s67
      %p76 = scmp.eq.s32.totalorder %s19, 0
      %p77 = por %p75, %p76
      %p78 = scmp.ne.s32.totalorder %s66, %s67
      %p79 = scmp.eq.s32.totalorder %s20, 1
      %p80 = por %p78, %p79
      %p82 = scmp.ne.s32.totalorder %s67, %s81
      %p83 = scmp.eq.s32.totalorder %s20, 0
      %p84 = por %p82, %p83
      %s85 = ssub.s32 %s14, %s21
      %p86 = scmp.eq.s32.totalorder %s85, 0
      %s88 = sadd.s32 %s87, 1
      %s89 = scalar_select %p86, %s87, %s88
      %p92 = pneg %p86
      %p93 = scmp.eq.s32.totalorder %s14, 1
      %p94 = por %p92, %p93
      %p95 = scmp.ne.s32.totalorder %s87, %s90
      %p96 = scmp.eq.s32.totalorder %s14, 0
      %p97 = por %p95, %p96
      %p98 = scmp.ne.s32.totalorder %s87, %s90
      %p99 = scmp.eq.s32.totalorder %s19, 1
      %p100 = por %p98, %p99
      %p101 = scmp.ne.s32.totalorder %s90, %s91
      %p102 = scmp.eq.s32.totalorder %s19, 0
      %p103 = por %p101, %p102
      %p104 = scmp.ne.s32.totalorder %s90, %s91
      %p105 = scmp.eq.s32.totalorder %s20, 1
      %p106 = por %p104, %p105
      %p108 = scmp.ne.s32.totalorder %s91, %s107
      %p109 = scmp.eq.s32.totalorder %s20, 0
      %p110 = por %p108, %p109
      %s111 = ssub.s32 %s14, %s21
      %p112 = scmp.eq.s32.totalorder %s111, 0
      %s114 = sadd.s32 %s113, 1
      %s115 = scalar_select %p112, %s113, %s114
      %p118 = pneg %p112
      %p119 = scmp.eq.s32.totalorder %s14, 1
      %p120 = por %p118, %p119
      %p121 = scmp.ne.s32.totalorder %s113, %s116
      %p122 = scmp.eq.s32.totalorder %s14, 0
      %p123 = por %p121, %p122
      %p124 = scmp.ne.s32.totalorder %s113, %s116
      %p125 = scmp.eq.s32.totalorder %s19, 1
      %p126 = por %p124, %p125
      %p127 = scmp.ne.s32.totalorder %s116, %s117
      %p128 = scmp.eq.s32.totalorder %s19, 0
      %p129 = por %p127, %p128
      %p130 = scmp.ne.s32.totalorder %s116, %s117
      %p131 = scmp.eq.s32.totalorder %s20, 1
      %p132 = por %p130, %p131
      %p134 = scmp.ne.s32.totalorder %s117, %s133
      %p135 = scmp.eq.s32.totalorder %s20, 0
      %p136 = por %p134, %p135
      %p137 = scmp.le.s32.totalorder 1, %s14
      %p138 = scmp.lt.s32.totalorder %s14, 3
      %p139 = pnand %p137, %p138
      %p140 = pneg %p139
      // Predicated region
      $region9: #{tpu_custom_call.1} parent=5 // pred_check
        _
      $region10: #{tpu_custom_call.1} parent=5 // pred_check_branch
        %142 = sbr.rel (%p139) target = $region12
      $region11: #{tpu_custom_call.1} parent=5 // pred_region
        %s143 = ssub.s32 %s14, 1
        // Predicated region
        $region13: #{tpu_custom_call.1} parent=11 // pred_check
          %p144 = pneg %p35
        $region14: #{tpu_custom_call.1} parent=11 // pred_check_branch
          %146 = sbr.rel (%p144) target = $region16
        $region15: #{tpu_custom_call.1} parent=11 // pred_region
          _
        $region16: #{tpu_custom_call.1} parent=11 // pred_fallthru
          _
        // Predicated region
        $region17: #{tpu_custom_call.1} parent=11 // pred_check
          %p147 = pneg %p56
        $region18: #{tpu_custom_call.1} parent=11 // pred_check_branch
          %149 = sbr.rel (%p147) target = $region20
        $region19: #{tpu_custom_call.1} parent=11 // pred_region
          _
        $region20: #{tpu_custom_call.1} parent=11 // pred_fallthru
          _
        // Predicated region
        $region21: #{tpu_custom_call.1} parent=11 // pred_check
          %p150 = pneg %p77
        $region22: #{tpu_custom_call.1} parent=11 // pred_check_branch
          %152 = sbr.rel (%p150) target = $region24
        $region23: #{tpu_custom_call.1} parent=11 // pred_region
          _
        $region24: #{tpu_custom_call.1} parent=11 // pred_fallthru
          _
      $region12: #{tpu_custom_call.1} parent=5 // pred_fallthru
        _
      %p153 = scmp.lt.s32.totalorder %s14, 2
      // Predicated region
      $region25: #{tpu_custom_call.1} parent=5 // pred_check
        %p154 = pneg %p153
      $region26: #{tpu_custom_call.1} parent=5 // pred_check_branch
        %156 = sbr.rel (%p154) target = $region28
      $region27: #{tpu_custom_call.1} parent=5 // pred_region
        // Predicated region
        $region29: #{tpu_custom_call.1} parent=27 // pred_check
          %p157 = pneg %p97
        $region30: #{tpu_custom_call.1} parent=27 // pred_check_branch
          %159 = sbr.rel (%p157) target = $region32
        $region31: #{tpu_custom_call.1} parent=27 // pred_region
          %p160 = scmp.lt.s32.totalorder %s14, 1
          %s161 = scalar_select %p160, %s14, 1
          %s162 = smul.addr %s161, 2
          %s163 = smul.addr %s162, 4
          %s164 = scalar_lea.vmem %s3, %s163
        $region32: #{tpu_custom_call.1} parent=27 // pred_fallthru
          _
      $region28: #{tpu_custom_call.1} parent=5 // pred_fallthru
        _
      %p165 = scmp.le.s32.totalorder 1, %s14
      %p166 = scmp.lt.s32.totalorder %s14, 3
      %p167 = pnand %p165, %p166
      %p168 = pneg %p167
      // Predicated region
      $region33: #{tpu_custom_call.1} parent=5 // pred_check
        _
      $region34: #{tpu_custom_call.1} parent=5 // pred_check_branch
        %170 = sbr.rel (%p167) target = $region36
      $region35: #{tpu_custom_call.1} parent=5 // pred_region
        %s171 = ssub.s32 %s14, 1
        %p172 = pneg %p35
        %p173 = pneg %p32
        %p174 = pneg %p56
        %p175 = pneg %p53
        %p176 = pneg %p77
        %p177 = pneg %p74
        %p178 = scmp.lt.s32.totalorder %s19, 1
        %s179 = scalar_select %p178, %s19, 1
        %s180 = smul.addr %s179, 2
        %s181 = smul.addr %s180, 4
        %s182 = scalar_lea.vmem %s3, %s181
        %p183 = pneg %p103
        %p184 = pneg %p100
        %p185 = pneg %p129
        %p186 = pneg %p126
        %s187 = sand.u32 %s116, 1
        %s188 = scalar_lea.sflag [#allocation4], %s187
        %s189 = sand.u32 %s116, 1
        %s190 = smul.addr %s189, 8
        %s191 = scalar_lea.vmem [#allocation3], %s190
        %p192 = scmp.lt.s32.totalorder %s19, 1
        %s193 = scalar_select %p192, %s19, 1
        %s194 = smul.addr %s193, 2
        %s195 = smul.addr %s194, 4
        %s196 = scalar_lea.vmem %s3, %s195
        %v197 = vld [vmem:[%s196] sm:$0xff]
        %v199 = vcombine.high %v197, %v197
        %vm201 = vcmask 1043456
        %v202 = vsel %vm201, %v197, 0.0
        %v203 = vsel %vm201, %v199, 0.0
        %v204 = vadd.f32 %v202, %v203
        %205 = vadd.xlane.f32.xlu0 %v204
        %v206 = vpop.xlane.xlu0 %205
        %v207 = vrot.slane %v206, 4
        %v208 = vadd.f32 %v206, %v207
        %v209 = vrot.slane %v208, 2
        %v210 = vadd.f32 %v208, %v209
        %v211 = vrot.slane %v210, 1
        %v212 = vadd.f32 %v210, %v211
        %s213 = vtos %v212
        %s214 = smul.f32 %s213, 0.0009765625
        %v215 = vstv %s214
        %v216 = vsub.f32 %v197, %v215
        %v217 = vmul.f32 %v216, %v216
        %v219 = vcombine.high %v217, %v217
        %v221 = vsel %vm201, %v217, 0.0
        %v222 = vsel %vm201, %v219, 0.0
        %v223 = vadd.f32 %v221, %v222
        %224 = vadd.xlane.f32.xlu0 %v223
        %v225 = vpop.xlane.xlu0 %224
        %v226 = vrot.slane %v225, 4
        %v227 = vadd.f32 %v225, %v226
        %v228 = vrot.slane %v227, 2
        %v229 = vadd.f32 %v227, %v228
        %v230 = vrot.slane %v229, 1
        %v231 = vadd.f32 %v229, %v230
        %s232 = vtos %v231
        %s233 = smul.f32 %s232, 0.0009765625
        %s234 = sadd.f32 %s233, 1e-08
        %v235 = vstv %s234
        %v236 = vrsqrt.pop %v235
        %s237 = vtos %v236
        %v238 = vld [vmem:[%s0] sm:$0xf]
        %v239 = vstv %s237
        %v240 = vmul.f32 %v238, %v239
        %242 = vset.pattern.permute.xlu0 0
        %243 = vperm.xlu0 %242, %v240
        %v244 = vpop.permute.xlu0 %243
        %v246 = vunpack.c.l.s4 839922192
        %v247 = vunpack.c.0.s8 %v246
        %v248 = vlaneseq
        %v249 = vshrl.u32 %v248, 7
        %v250 = vsub.s32 %v247, %v249
        %v251 = vrot.slane %v244, %v250
        %v253 = vmul.f32 %v216, %v251
        %v254 = vld [vmem:[%s1] sm:$0xf]
        %256 = vset.pattern.permute.xlu0 0
        %257 = vperm.xlu0 %256, %v254
        %v258 = vpop.permute.xlu0 %257
        %v260 = vunpack.c.l.s4 839922192
        %v261 = vunpack.c.0.s8 %v260
        %v262 = vlaneseq
        %v263 = vshrl.u32 %v262, 7
        %v264 = vsub.s32 %v261, %v263
        %v265 = vrot.slane %v258, %v264
        %v267 = vadd.f32 %v253, %v265
        %s268 = sld [smem:[#allocation2]]
        %vm269 = vcmp.gt.f32.partialorder %v267, 0.0
        %v270 = vstv %s268
        %v271 = vmul.f32 %v270, %v267
        %v272 = vsel %vm269, %v267, %v271
        %273 = vst [vmem:[%s191] sm:$0xff] %v272
        %s274 = sand.u32 %s116, 1
        %s275 = scalar_lea.sflag [#allocation4], %s274
        %s276 = sand.u32 %s116, 1
        %s277 = smul.addr %s276, 8
        %s278 = scalar_lea.vmem [#allocation3], %s277
        // Predicated region
        $region37: #{tpu_custom_call.1} parent=35 // pred_check
          %p279 = pneg %p126
        $region38: #{tpu_custom_call.1} parent=35 // pred_check_branch
          %281 = sbr.rel (%p279) target = $region40
        $region39: #{tpu_custom_call.1} parent=35 // pred_region
          %s283 = ssub.s32 128, 128
          %284 = vsyncadd %s275, %s283
          %s285 = smul.addr %s19, 2
          %s286 = smul.addr %s285, 64
          %s287 = scalar_lea.hbm %s4, %s286
          %s289 = sshll.u32 %s278, 4
          %s290 = int_to_ptr.vmem [resolvable:$true] %s289
          %292 = dma.vmem_to_hbm [thread:$0]  %s290, 128, %s287, %s275
        $region40: #{tpu_custom_call.1} parent=35 // pred_fallthru
          _
      $region36: #{tpu_custom_call.1} parent=5 // pred_fallthru
        _
      %p293 = scmp.le.s32.totalorder 2, %s14
      // Predicated region
      $region41: #{tpu_custom_call.1} parent=5 // pred_check
        %p294 = pneg %p293
      $region42: #{tpu_custom_call.1} parent=5 // pred_check_branch
        %296 = sbr.rel (%p294) target = $region44
      $region43: #{tpu_custom_call.1} parent=5 // pred_region
        %s297 = ssub.s32 %s14, 2
        // Predicated region
        $region45: #{tpu_custom_call.1} parent=43 // pred_check
          %p298 = pneg %p132
        $region46: #{tpu_custom_call.1} parent=43 // pred_check_branch
          %300 = sbr.rel (%p298) target = $region48
        $region47: #{tpu_custom_call.1} parent=43 // pred_region
          %s301 = sand.u32 %s117, 1
          %s302 = scalar_lea.sflag [#allocation4], %s301
          %s303 = sand.u32 %s117, 1
          %s304 = smul.addr %s303, 8
          %s305 = scalar_lea.vmem [#allocation3], %s304
          %306 = dma.done %s302, 128
        $region48: #{tpu_custom_call.1} parent=43 // pred_fallthru
          _
      $region44: #{tpu_custom_call.1} parent=5 // pred_fallthru
        _
    $region6: #{tpu_custom_call.1} parent=1 // loop_footer
      %s18 = sadd.s32 1, %s14
    $region7: #{tpu_custom_call.1} parent=1 // loop_footer_branch
      %13 = sbr.rel target = $region3
    $region8: #{tpu_custom_call.1} parent=1 // loop_exit
      _
    %307 = vsyncpa [#allocation4], 1
    %s308 = scalar_lea.sflag [#allocation4], 1
    %309 = vsyncpa %s308, 1

</llo_original>
